<compile_context>
chip_gen: v7x
topology: tpu7x:2x2x1
jax: 0.10.0
libtpu: 0.0.40
codegen_flags: <defaults>
</compile_context>

<pallas_src>
import jax
import jax.numpy as jnp
from jax.experimental import pallas as pl
from jax.experimental.pallas import tpu as pltpu


# ----------------------------------------------------------------------------
# Primary: zero-copy aliased identity (no DMA, no compute, empty body).
# ----------------------------------------------------------------------------
def _aliased_identity_kernel(x_hbm_ref, o_hbm_ref):
    # The output HBM buffer *is* the input buffer (input_output_aliases), so
    # there is nothing to move: the identity result is already in place.
    del x_hbm_ref, o_hbm_ref


def _aliased_identity(x: jax.Array) -> jax.Array:
    return pl.pallas_call(
        _aliased_identity_kernel,
        out_shape=jax.ShapeDtypeStruct(x.shape, x.dtype),
        in_specs=[pl.BlockSpec(memory_space=pl.ANY)],   # raw HBM ref, no auto-DMA
        out_specs=pl.BlockSpec(memory_space=pl.ANY),    # raw HBM ref, no auto-DMA
        input_output_aliases={0: 0},                    # output aliases input
        compiler_params=pltpu.CompilerParams(has_side_effects=True),
    )(x)


# ----------------------------------------------------------------------------
# Fallback: lane-dense, byte-budgeted, pipelined identity copy.
# ----------------------------------------------------------------------------
def _copy_kernel(x_ref, o_ref):
    o_ref[...] = x_ref[...]


_LANE = 128
_TARGET_BLOCK_BYTES = 4 * 1024 * 1024   # ~4 MiB DMAs keep per-step overhead small


def _tiled_identity_copy(x: jax.Array) -> jax.Array:
    orig_shape = x.shape
    size = x.size
    itemsize = jnp.dtype(x.dtype).itemsize

    # Lane-dense 2D view: last dim a multiple of 128 lanes (full-width vst).
    width = 0
    for w in (8 * _LANE, 4 * _LANE, 2 * _LANE, _LANE):
        if size % w == 0:
            width = w
            break
    if width == 0:
        # A (1, N) view would waste 7/8 of every vreg and need masked partial
        # stores.  The module is an identity, so hand the input straight back.
        # TODO(synk): no lane-dense Pallas tiling for sizes not divisible by 128.
        return x

    rows = size // width
    x2d = x.reshape(rows, width)

    # Sublane packing minimum: 8 rows for 4-byte, 16 for 2-byte, 32 for 1-byte.
    sublane = max(8, 32 // max(1, itemsize))

    if rows >= 2 * sublane:
        # Dtype-aware byte budget, and at least 2 grid blocks so the "parallel"
        # grid axis can be split across v7x's two TensorCores.
        budget_rows = max(sublane, _TARGET_BLOCK_BYTES // (width * itemsize))
        block_rows = min(budget_rows, (rows + 1) // 2)
        block_rows = max(sublane, (block_rows // sublane) * sublane)
    else:
        block_rows = rows  # single full-extent block (always a legal block shape)

    grid = (pl.cdiv(rows, block_rows),)

    out2d = pl.pallas_call(
        _copy_kernel,
        out_shape=jax.ShapeDtypeStruct((rows, width), x.dtype),
        grid=grid,
        in_specs=[pl.BlockSpec((block_rows, width), lambda i: (i, 0))],
        out_specs=pl.BlockSpec((block_rows, width), lambda i: (i, 0)),
        compiler_params=pltpu.CompilerParams(
            # Row tiles are independent -> shard across v7x's two TensorCores.
            dimension_semantics=("parallel",),
            # 4 MiB block x (in + out) x double buffering = 16 MiB working set;
            # raise the scoped limit so it fits on v5e (16 MiB default) and has
            # headroom on v6e/v7x without exceeding v7x's 64 MiB physical VMEM.
            vmem_limit_bytes=32 * 1024 * 1024,
        ),
    )(x2d)
    return out2d.reshape(orig_shape)


# ----------------------------------------------------------------------------
# Implementation selection: probe the aliased kernel once, then memoize.
# ----------------------------------------------------------------------------
_ALIASED_OK = None  # None = unprobed; True/False after the first call.


def _identity(x: jax.Array) -> jax.Array:
    global _ALIASED_OK
    if _ALIASED_OK is None:
        try:
            out = jax.block_until_ready(_aliased_identity(x))  # one-time probe
            _ALIASED_OK = True
            return out
        except Exception:
            _ALIASED_OK = False
    if _ALIASED_OK:
        return _aliased_identity(x)
    return _tiled_identity_copy(x)


# ----------------------------------------------------------------------------
# Forward (Printer semantics): print(t); print(t.shape); return t
# ----------------------------------------------------------------------------
def printer_forward(x: jax.Array) -> jax.Array:
    out = _identity(x)
    # Host-side reproduction of the PyTorch side effects.  NOTE: printing the
    # full tensor forces one device->host transfer + repr(); that cost is
    # inherent to the module's semantics, not to the kernel.
    print(out)
    print(out.shape)
    return out


if __name__ == "__main__":
    key = jax.random.PRNGKey(0)
    # Small NCHW input consistent with a conv-net "printer" debug layer.
    x = jax.random.normal(key, (2, 4, 16, 16), dtype=jnp.float32)

    y = printer_forward(x)
    y = jax.block_until_ready(y)

    # Identity semantics check.
    assert y.shape == x.shape
    assert y.dtype == x.dtype
    assert bool(jnp.all(y == x))

    print("KERNEL_OK")
</pallas_src>

<mosaic_0001>
module attributes {stable_mosaic.version = 11 : i64} {
  func.func @_aliased_identity_kernel(%arg0: memref<2x4x16x16xf32, #tpu.memory_space<any>>, %arg1: memref<2x4x16x16xf32, #tpu.memory_space<any>>) attributes {dimension_semantics = [], scalar_prefetch = 0 : i64, scratch_operands = 0 : i64, tpu.core_type = #tpu.core_type<tc>} {
    return
  }
}

module attributes {stable_mosaic.version = 11 : i64} {
  func.func @_copy_kernel(%arg0: i32, %arg1: memref<2x1024xf32, #tpu.memory_space<vmem>>, %arg2: memref<2x1024xf32, #tpu.memory_space<vmem>>) attributes {dimension_semantics = [#tpu.dimension_semantics<parallel>], iteration_bounds = array<i64: 1>, scalar_prefetch = 0 : i64, scratch_operands = 0 : i64, tpu.core_type = #tpu.core_type<tc>, window_params = [{transform_indices = @transform_0, window_bounds = array<i64: 2, 1024>}, {transform_indices = @transform_1, window_bounds = array<i64: 2, 1024>}]} {
    %c0 = arith.constant 0 : index
    %c0_0 = arith.constant 0 : index
    %0 = vector.load %arg1[%c0, %c0_0] : memref<2x1024xf32, #tpu.memory_space<vmem>>, vector<2x1024xf32>
    %c0_1 = arith.constant 0 : index
    %c0_2 = arith.constant 0 : index
    %1 = vector.load %arg2[%c0_1, %c0_2] : memref<2x1024xf32, #tpu.memory_space<vmem>>, vector<2x1024xf32>
    tpu.vector_store %arg2[%c0_1, %c0_2], %0 {strides = array<i32>} : memref<2x1024xf32, #tpu.memory_space<vmem>>, vector<2x1024xf32>,
    return
  }
  func.func @transform_0(%arg0: i32) -> (i32, i32) {
    %c0_i32 = arith.constant 0 : i32
    %c0_i32_0 = arith.constant 0 : i32
    return %arg0, %c0_i32 : i32, i32
  }
  func.func @transform_1(%arg0: i32) -> (i32, i32) {
    %c0_i32 = arith.constant 0 : i32
    %c0_i32_0 = arith.constant 0 : i32
    return %arg0, %c0_i32 : i32, i32
  }
}

</mosaic_0001>

<llo_original>
// kernel: tpu_custom_call.1
$region0: #{tpu_custom_call.1}
  #allocation0 [shape = 'u32[]', space=smem, size = 0x4, offset = 0x4, fixed_abs, tag = 'smem constant byte address 0x4 - core index']
  #allocation1 [shape = 'u32[144,128]{1,0:T(1,128)}', space=vmem, size = 0x12000, scoped, tag = 'internal scratch']
  %s0 = inlined_call_operand.hbm [shape: f32[2,4,16,16], index: 0, kind: input, shape index: {}, may-alias: {0,1}]
  %s1 = inlined_call_operand.hbm [shape: f32[2,4,16,16], index: 1, kind: output, shape index: {}, may-alias: {0,1}]
  %s2 = sld [smem:[#allocation0]]
  $region2: #{tpu_custom_call.1} parent=0
    _
  %s4 = ssub.s32 1, %s2
  %s5 = scalar_select 0, %s4, %s2

// kernel: tpu_custom_call.1
$region0: #{tpu_custom_call.1}
  #allocation0 [shape = 'u32[]', space=smem, size = 0x4, offset = 0x4, fixed_abs, tag = 'smem constant byte address 0x4 - core index']
  #allocation1 [shape = 'u32[144,128]{1,0:T(1,128)}', space=vmem, size = 0x12000, scoped, tag = 'internal scratch']
  %s0 = inlined_call_operand.hbm [shape: f32[2,1024], index: 0, kind: input, shape index: {}]
  %s1 = inlined_call_operand.hbm [shape: f32[2,1024], index: 1, kind: output, shape index: {}]
  %s2 = sld [smem:[#allocation0]]
  $region18: #{tpu_custom_call.1} parent=0
    _
  %s4 = ssub.s32 1, %s2
  %s5 = scalar_select 0, %s4, %s2
  $region1: #{tpu_custom_call.1} parent=0
    #allocation2 [shape = 'u8[8192]{0}', space=vmem, size = 0x2000, scoped, tag = 'input window, operand 0, single buffered']
    #allocation3 [shape = 's32[1]{0}', space=sflag, size = 0x4, scoped, tag = 'scoped memory for tpu_custom_call.1']
    #allocation4 [shape = 's32[1]{0}', space=sflag, size = 0x4, scoped, tag = 'scoped memory for tpu_custom_call.1']
    #allocation5 [shape = 'u8[8192]{0}', space=vmem, size = 0x2000, scoped, tag = 'output window, operand 0, single buffered']
    %6 = vsyncpa [#allocation3], 0
    %7 = vsyncpa [#allocation4], 0
    // Predicated region
    $region2: #{tpu_custom_call.1} parent=1 // pred_check
      _
    $region3: #{tpu_custom_call.1} parent=1 // pred_check_branch
      %9 = sbr.rel (0) target = $region5
    $region4: #{tpu_custom_call.1} parent=1 // pred_region
      %s11 = ssub.s32 256, 256
      %12 = vsyncadd [#allocation3], %s11
      %s14 = sshll.u32 [#allocation2], 4
      %s15 = int_to_ptr.vmem [resolvable:$true] %s14
      %17 = dma.hbm_to_vmem [thread:$0]  %s0, 256, %s15, [#allocation3]
    $region5: #{tpu_custom_call.1} parent=1 // pred_fallthru
      _
    // Predicated region
    $region6: #{tpu_custom_call.1} parent=1 // pred_check
      _
    $region7: #{tpu_custom_call.1} parent=1 // pred_check_branch
      %19 = sbr.rel (0) target = $region9
    $region8: #{tpu_custom_call.1} parent=1 // pred_region
      %20 = dma.done [#allocation3], 256
    $region9: #{tpu_custom_call.1} parent=1 // pred_fallthru
      _
    %v21 = vld [vmem:[#allocation2] sm:$0xff]
    %v22 = vld [vmem:[#allocation2 + $0x8] sm:$0xff]
    %23 = vst [vmem:[#allocation5] sm:$0xff] %v21
    %24 = vst [vmem:[#allocation5 + $0x8] sm:$0xff] %v22
    // Predicated region
    $region10: #{tpu_custom_call.1} parent=1 // pred_check
      _
    $region11: #{tpu_custom_call.1} parent=1 // pred_check_branch
      %26 = sbr.rel (0) target = $region13
    $region12: #{tpu_custom_call.1} parent=1 // pred_region
      %s28 = ssub.s32 256, 256
      %29 = vsyncadd [#allocation4], %s28
      %s31 = sshll.u32 [#allocation5], 4
      %s32 = int_to_ptr.vmem [resolvable:$true] %s31
      %34 = dma.vmem_to_hbm [thread:$0]  %s32, 256, %s1, [#allocation4]
    $region13: #{tpu_custom_call.1} parent=1 // pred_fallthru
      _
    // Predicated region
    $region14: #{tpu_custom_call.1} parent=1 // pred_check
      _
    $region15: #{tpu_custom_call.1} parent=1 // pred_check_branch
      %36 = sbr.rel (0) target = $region17
    $region16: #{tpu_custom_call.1} parent=1 // pred_region
      %37 = dma.done [#allocation4], 256
    $region17: #{tpu_custom_call.1} parent=1 // pred_fallthru
      _
    %38 = vsyncpa [#allocation3], 1
    %39 = vsyncpa [#allocation4], 1

</llo_original>
